<compile_context>
chip_gen: v5e
topology: v5e:2x2
jax: 0.10.0
libtpu: 0.0.40
codegen_flags: <defaults>
</compile_context>

<pallas_src>
import jax
import jax.numpy as jnp
from jax.experimental import pallas as pl
from jax.experimental.pallas import tpu as pltpu


def _mbconv_residual_kernel(x_ref, w_ref, o_ref):
    # x_ref: (G*C, t_hw) tile — G images' channels on the sublane/contraction
    #        axis, spatial positions lane-dense on the 128-wide lane axis.
    # w_ref: (G*C, G*C) block-diagonal weight kron(I_G, W + I); residual add is
    #        already folded in, so the body is matmul -> cast -> store.
    o_ref[...] = jnp.dot(
        w_ref[...], x_ref[...], preferred_element_type=jnp.float32
    ).astype(o_ref.dtype)


def _vmem_capacity_bytes():
    """Physical VMEM of the current chip; conservative 64 MiB fallback (v7x)."""
    try:
        cap = getattr(pltpu.get_tpu_info(), "vmem_capacity_bytes", None)
        if cap:
            return int(cap)
    except Exception:
        pass
    return 64 * 1024 * 1024


def _pick_group(n, c, mxu_target):
    """Largest divisor G of N with G*C <= mxu_target (fills the MXU M/K dims)."""
    g_max = max(1, mxu_target // c)
    best = 1
    for g in range(1, min(n, g_max) + 1):
        if n % g == 0:
            best = g
    return best


def _pick_hw_tile(hw_pad, gc, itemsize, budget, n_outer, min_grid_steps):
    """Largest spatial tile (multiple of 128 dividing hw_pad) whose per-step
    VMEM footprint fits `budget`; prefer tiles that still leave at least
    `min_grid_steps` grid steps (keeps v7x's 2 TCs + pipeline busy)."""
    def need(t):
        return (4 * gc * t * itemsize        # input + output tiles, 2x buffered
                + gc * t * 4                 # f32 MXU result before the cast
                + 2 * gc * gc * itemsize)    # grid-invariant weight (2 buffers)

    cands = [t for t in range(128, hw_pad + 128, 128)
             if hw_pad % t == 0 and need(t) <= budget]
    if not cands:
        return 128
    pref = [t for t in cands if n_outer * (hw_pad // t) >= min_grid_steps]
    return max(pref) if pref else max(cands)


def mbconv_residual(x_nchw, w, *, mxu_target=256, min_grid_steps=4,
                    vmem_limit_bytes=None):
    """x_nchw: (N, C, H, W).  w: (C, C) 1x1-conv weight (out_c, in_c).
    Returns fn(x) + x with fn = 1x1 conv; same shape/dtype as x_nchw."""
    N, C, H, W = x_nchw.shape
    HW = H * W
    dtype = x_nchw.dtype
    itemsize = jnp.dtype(dtype).itemsize

    # Fold the residual add into the weight:  (W + I) @ x == W @ x + x.
    w_fold = w.astype(jnp.float32) + jnp.eye(C, dtype=jnp.float32)

    # Block the batch axis by G so the matmul M/K dims reach MXU width.
    G = _pick_group(N, C, mxu_target)
    GC = G * C
    w_blk = jnp.kron(jnp.eye(G, dtype=jnp.float32), w_fold).astype(dtype)

    # Free reshape NCHW -> (N, C, HW); pad HW to a multiple of 128 so output
    # stores are unmasked / lane-dense; then merge G images into the sublane
    # (channel) axis — row-major, so this reshape is also free.
    x_flat = x_nchw.reshape(N, C, HW)
    HW_pad = ((HW + 127) // 128) * 128
    if HW_pad != HW:
        x_flat = jnp.pad(x_flat, ((0, 0), (0, 0), (0, HW_pad - HW)))
    n_outer = N // G
    x_grp = x_flat.reshape(n_outer, GC, HW_pad)

    # Per-generation VMEM budget: ~40/48 MiB on 64 MiB parts (v7x),
    # ~104/112 MiB on 128 MiB parts (v5e/v6e).
    cap = _vmem_capacity_bytes()
    budget = max(cap - 24 * (1 << 20), cap // 2)
    if vmem_limit_bytes is None:
        vmem_limit_bytes = max(cap - 16 * (1 << 20), budget)

    t_hw = _pick_hw_tile(HW_pad, GC, itemsize, budget, n_outer, min_grid_steps)
    grid = (n_outer, HW_pad // t_hw)

    out_grp = pl.pallas_call(
        _mbconv_residual_kernel,
        out_shape=jax.ShapeDtypeStruct((n_outer, GC, HW_pad), dtype),
        grid_spec=pltpu.PrefetchScalarGridSpec(
            num_scalar_prefetch=0,
            grid=grid,
            in_specs=[
                # Outer (image-group) dim squeezed; kernel sees (G*C, t_hw).
                pl.BlockSpec((pl.Squeezed(), GC, t_hw), lambda n, j: (n, 0, j)),
                # Grid-invariant weight: constant block index, so it is DMA'd
                # once; its double-buffer cost (2*GC^2 bytes) is negligible.
                pl.BlockSpec((GC, GC), lambda n, j: (0, 0)),
            ],
            out_specs=pl.BlockSpec((pl.Squeezed(), GC, t_hw),
                                   lambda n, j: (n, 0, j)),
        ),
        compiler_params=pltpu.CompilerParams(
            # No reduction axis: both grid axes are independent, so v7x can
            # shard (image-group, spatial-tile) steps across its two TCs.
            dimension_semantics=("parallel", "parallel"),
            vmem_limit_bytes=int(vmem_limit_bytes),
        ),
    )(x_grp, w_blk)

    out = out_grp.reshape(N, C, HW_pad)[:, :, :HW].reshape(N, C, H, W)
    return out


def _reference(x_nchw, w):
    # Plain-JAX reference (f32): 1x1 conv + residual add (Dropsample = identity).
    x32 = x_nchw.astype(jnp.float32)
    branch = jnp.einsum("oc,nchw->nohw", w.astype(jnp.float32), x32)
    return branch + x32


if __name__ == "__main__":
    key = jax.random.PRNGKey(0)
    k_x, k_w = jax.random.split(key)

    N, C, H, W = 2, 32, 16, 16          # HW = 256 -> lane-dense tiles
    x = jax.random.normal(k_x, (N, C, H, W), dtype=jnp.float32)
    # deterministic synthetic 1x1-conv weight for the residual branch `fn`
    w = jax.random.normal(k_w, (C, C), dtype=jnp.float32) * 0.1

    # f32 storage path (tight numerical check).
    out = jax.block_until_ready(mbconv_residual(x, w))
    ref = _reference(x, w)
    assert out.shape == x.shape and out.dtype == x.dtype
    assert jnp.allclose(out, ref, atol=1e-4, rtol=1e-4)

    # bf16 storage path (recommended for inference: halves HBM bytes on this
    # memory-bound op); MXU accumulation stays f32.
    x_bf = x.astype(jnp.bfloat16)
    w_bf = w.astype(jnp.bfloat16)
    out_bf = jax.block_until_ready(mbconv_residual(x_bf, w_bf))
    ref_bf = _reference(x_bf.astype(jnp.float32), w_bf.astype(jnp.float32))
    assert out_bf.shape == x.shape and out_bf.dtype == jnp.bfloat16
    assert jnp.allclose(out_bf.astype(jnp.float32), ref_bf, atol=5e-2, rtol=5e-2)

    print("KERNEL_OK")
</pallas_src>

<mosaic_0001>
module attributes {stable_mosaic.version = 11 : i64} {
  func.func @_mbconv_residual_kernel(%arg0: i32, %arg1: i32, %arg2: memref<1x64x256xf32, #tpu.memory_space<vmem>>, %arg3: memref<64x64xf32, #tpu.memory_space<vmem>>, %arg4: memref<1x64x256xf32, #tpu.memory_space<vmem>>) attributes {dimension_semantics = [#tpu.dimension_semantics<parallel>, #tpu.dimension_semantics<parallel>], iteration_bounds = array<i64: 1, 1>, scalar_prefetch = 0 : i64, scratch_operands = 0 : i64, tpu.core_type = #tpu.core_type<tc>, window_params = [{transform_indices = @transform_0, window_bounds = array<i64: 1, 64, 256>}, {pipeline_mode = #tpu.pipeline_mode<synchronous>, transform_indices = @transform_1, window_bounds = array<i64: 64, 64>}, {transform_indices = @transform_2, window_bounds = array<i64: 1, 64, 256>}]} {
    %c0 = arith.constant 0 : index
    %c0_0 = arith.constant 0 : index
    %0 = vector.load %arg3[%c0, %c0_0] : memref<64x64xf32, #tpu.memory_space<vmem>>, vector<64x64xf32>
    %c0_1 = arith.constant 0 : index
    %c0_2 = arith.constant 0 : index
    %c0_3 = arith.constant 0 : index
    %1 = vector.load %arg2[%c0_1, %c0_2, %c0_3] : memref<1x64x256xf32, #tpu.memory_space<vmem>>, vector<1x64x256xf32>
    %2 = vector.shape_cast %1 : vector<1x64x256xf32> to vector<64x256xf32>
    %cst = arith.constant dense<0.000000e+00> : vector<64x256xf32>
    %3 = tpu.matmul %0, %2, %cst {dimension_numbers = #tpu.dot_dimension_numbers<[1], [0], [0], [1], [0, 0, 1, 1], [], []>} : vector<64x64xf32>, vector<64x256xf32>, vector<64x256xf32> -> vector<64x256xf32>
    %c0_4 = arith.constant 0 : index
    %c0_5 = arith.constant 0 : index
    %c0_6 = arith.constant 0 : index
    %4 = vector.load %arg4[%c0_4, %c0_5, %c0_6] : memref<1x64x256xf32, #tpu.memory_space<vmem>>, vector<1x64x256xf32>
    %5 = vector.shape_cast %4 : vector<1x64x256xf32> to vector<64x256xf32>
    %6 = vector.shape_cast %3 : vector<64x256xf32> to vector<1x64x256xf32>
    tpu.vector_store %arg4[%c0_4, %c0_5, %c0_6], %6 {strides = array<i32>} : memref<1x64x256xf32, #tpu.memory_space<vmem>>, vector<1x64x256xf32>,
    return
  }
  func.func @transform_0(%arg0: i32, %arg1: i32) -> (i32, i32, i32) {
    %c0_i32 = arith.constant 0 : i32
    %c0_i32_0 = arith.constant 0 : i32
    return %arg0, %c0_i32, %arg1 : i32, i32, i32
  }
  func.func @transform_1(%arg0: i32, %arg1: i32) -> (i32, i32) {
    %c0_i32 = arith.constant 0 : i32
    %c0_i32_0 = arith.constant 0 : i32
    %c0_i32_1 = arith.constant 0 : i32
    return %c0_i32, %c0_i32_0 : i32, i32
  }
  func.func @transform_2(%arg0: i32, %arg1: i32) -> (i32, i32, i32) {
    %c0_i32 = arith.constant 0 : i32
    %c0_i32_0 = arith.constant 0 : i32
    return %arg0, %c0_i32, %arg1 : i32, i32, i32
  }
}

</mosaic_0001>

<llo_original>
// kernel: tpu_custom_call.1
$region0: #{tpu_custom_call.1}
  #allocation0 [shape = 'u32[]', space=smem, size = 0x4, offset = 0x4, fixed_abs, tag = 'smem constant byte address 0x4 - core index']
  #allocation1 [shape = 'u32[72,128]{1,0:T(1,128)}', space=vmem, size = 0x9000, scoped, tag = 'internal scratch']
  %s0 = inlined_call_operand.hbm [shape: f32[1,64,256], index: 0, kind: input, shape index: {}]
  %s1 = inlined_call_operand.hbm [shape: f32[64,64], index: 1, kind: input, shape index: {}]
  %s2 = inlined_call_operand.hbm [shape: f32[1,64,256], index: 2, kind: output, shape index: {}]
  %s3 = sld [smem:[#allocation0]]
  $region26: #{tpu_custom_call.1} parent=0
    _
  %s5 = ssub.s32 1, %s3
  %s6 = scalar_select 0, %s5, %s3
  $region1: #{tpu_custom_call.1} parent=0
    #allocation2 [shape = 'u8[65536]{0}', space=vmem, size = 0x10000, scoped, tag = 'input window, operand 0, single buffered']
    #allocation3 [shape = 's32[1]{0}', space=sflag, size = 0x4, scoped, tag = 'scoped memory for tpu_custom_call.1']
    #allocation4 [shape = 's32[1]{0}', space=sflag, size = 0x4, scoped, tag = 'scoped memory for tpu_custom_call.1']
    #allocation5 [shape = 'u8[32768]{0}', space=vmem, size = 0x8000, scoped, tag = 'input window, operand 1, single buffered']
    #allocation6 [shape = 's32[1]{0}', space=sflag, size = 0x4, scoped, tag = 'scoped memory for tpu_custom_call.1']
    #allocation7 [shape = 'u8[65536]{0}', space=vmem, size = 0x10000, scoped, tag = 'output window, operand 0, single buffered']
    %7 = vsyncpa [#allocation3], 0
    %8 = vsyncpa [#allocation6], 0
    %9 = vsyncpa [#allocation4], 0
    // Predicated region
    $region2: #{tpu_custom_call.1} parent=1 // pred_check
      _
    $region3: #{tpu_custom_call.1} parent=1 // pred_check_branch
      %11 = sbr.rel (0) target = $region5
    $region4: #{tpu_custom_call.1} parent=1 // pred_region
      %13 = vsyncadd [#allocation3], 0
      %s14 = sshll.u32 %s0, 4
      %s15 = int_to_ptr.hbm [resolvable:$true] %s14
      %s16 = sshll.u32 [#allocation2], 4
      %s17 = int_to_ptr.vmem [resolvable:$true] %s16
      %22 = dma.hbm_to_vmem [thread:$0]  %s15, 2048, %s17, [#allocation3], 256, 256, 16
    $region5: #{tpu_custom_call.1} parent=1 // pred_fallthru
      _
    // Predicated region
    $region6: #{tpu_custom_call.1} parent=1 // pred_check
      _
    $region7: #{tpu_custom_call.1} parent=1 // pred_check_branch
      %24 = sbr.rel (0) target = $region9
    $region8: #{tpu_custom_call.1} parent=1 // pred_region
      %26 = vsyncadd [#allocation6], 0
      %s27 = sshll.u32 %s1, 4
      %s28 = int_to_ptr.hbm [resolvable:$true] %s27
      %s29 = sshll.u32 [#allocation5], 4
      %s30 = int_to_ptr.vmem [resolvable:$true] %s29
      %35 = dma.hbm_to_vmem [thread:$0]  %s28, 1024, %s30, [#allocation6], 128, 128, 8
    $region9: #{tpu_custom_call.1} parent=1 // pred_fallthru
      _
    // Predicated region
    $region10: #{tpu_custom_call.1} parent=1 // pred_check
      _
    $region11: #{tpu_custom_call.1} parent=1 // pred_check_branch
      %37 = sbr.rel (0) target = $region13
    $region12: #{tpu_custom_call.1} parent=1 // pred_region
      %39 = dma.done [#allocation3], 2048
    $region13: #{tpu_custom_call.1} parent=1 // pred_fallthru
      _
    // Predicated region
    $region14: #{tpu_custom_call.1} parent=1 // pred_check
      _
    $region15: #{tpu_custom_call.1} parent=1 // pred_check_branch
      %41 = sbr.rel (0) target = $region17
    $region16: #{tpu_custom_call.1} parent=1 // pred_region
      %43 = dma.done [#allocation6], 1024
    $region17: #{tpu_custom_call.1} parent=1 // pred_fallthru
      _
    %v44 = vld [vmem:[#allocation5] sm:$0xff]
    %v45 = vld [vmem:[#allocation5 + $0x8] sm:$0xff]
    %v46 = vld [vmem:[#allocation5 + $0x10] sm:$0xff]
    %v47 = vld [vmem:[#allocation5 + $0x18] sm:$0xff]
    %v48 = vld [vmem:[#allocation5 + $0x20] sm:$0xff]
    %v49 = vld [vmem:[#allocation5 + $0x28] sm:$0xff]
    %v50 = vld [vmem:[#allocation5 + $0x30] sm:$0xff]
    %v51 = vld [vmem:[#allocation5 + $0x38] sm:$0xff]
    %v52 = vld [vmem:[#allocation2] sm:$0xff]
    %v53 = vld [vmem:[#allocation2 + $0x8] sm:$0xff]
    %v54 = vld [vmem:[#allocation2 + $0x10] sm:$0xff]
    %v55 = vld [vmem:[#allocation2 + $0x18] sm:$0xff]
    %v56 = vld [vmem:[#allocation2 + $0x20] sm:$0xff]
    %v57 = vld [vmem:[#allocation2 + $0x28] sm:$0xff]
    %v58 = vld [vmem:[#allocation2 + $0x30] sm:$0xff]
    %v59 = vld [vmem:[#allocation2 + $0x38] sm:$0xff]
    %v60 = vld [vmem:[#allocation2 + $0x40] sm:$0xff]
    %v61 = vld [vmem:[#allocation2 + $0x48] sm:$0xff]
    %v62 = vld [vmem:[#allocation2 + $0x50] sm:$0xff]
    %v63 = vld [vmem:[#allocation2 + $0x58] sm:$0xff]
    %v64 = vld [vmem:[#allocation2 + $0x60] sm:$0xff]
    %v65 = vld [vmem:[#allocation2 + $0x68] sm:$0xff]
    %v66 = vld [vmem:[#allocation2 + $0x70] sm:$0xff]
    %v67 = vld [vmem:[#allocation2 + $0x78] sm:$0xff]
    %vm68 = vcmask 523264
    %v70 = vsel %vm68, %v44, 0
    %v73 = vsel %vm68, %v45, 0
    %v76 = vsel %vm68, %v46, 0
    %v79 = vsel %vm68, %v47, 0
    %v82 = vsel %vm68, %v48, 0
    %v85 = vsel %vm68, %v49, 0
    %v88 = vsel %vm68, %v50, 0
    %v91 = vsel %vm68, %v51, 0
    %93 = vmatpush.msra.mxu0 0.0
    %94 = vmatpush.msra.mxu0 0.0
    %95 = vmatpush.msra.mxu0 0.0
    %96 = vmatpush.msra.mxu0 0.0
    %97 = vmatpush.msra.mxu0 0.0
    %98 = vmatpush.msra.mxu0 0.0
    %99 = vmatpush.msra.mxu0 0.0
    %100 = vmatpush.msra.mxu0 0.0
    %101 = vmatpush.msra.mxu0 %v66
    %102 = vmatpush.msra.mxu0 %v64
    %103 = vmatpush.msra.mxu0 %v62
    %104 = vmatpush.msra.mxu0 %v60
    %105 = vmatpush.msra.mxu0 %v58
    %106 = vmatpush.msra.mxu0 %v56
    %107 = vmatpush.msra.mxu0 %v54
    %108 = vmatpush.msra.mxu0 %v52
    %109 = vmatmul.f32.gmra.mxu0 %v70
    %v110 = vpop.f32.mrf.mxu0
    %v111 = vadd.f32 0.0, %v110
    %112 = vmatmul.f32.gmra.mxu0 %v73
    %v113 = vpop.f32.mrf.mxu0
    %v114 = vadd.f32 0.0, %v113
    %115 = vmatmul.f32.gmra.mxu0 %v76
    %v116 = vpop.f32.mrf.mxu0
    %v117 = vadd.f32 0.0, %v116
    %118 = vmatmul.f32.gmra.mxu0 %v79
    %v119 = vpop.f32.mrf.mxu0
    %v120 = vadd.f32 0.0, %v119
    %121 = vmatmul.f32.gmra.mxu0 %v82
    %v122 = vpop.f32.mrf.mxu0
    %v123 = vadd.f32 0.0, %v122
    %124 = vmatmul.f32.gmra.mxu0 %v85
    %v125 = vpop.f32.mrf.mxu0
    %v126 = vadd.f32 0.0, %v125
    %127 = vmatmul.f32.gmra.mxu0 %v88
    %v128 = vpop.f32.mrf.mxu0
    %v129 = vadd.f32 0.0, %v128
    %130 = vmatmul.f32.gmra.mxu0 %v91
    %v131 = vpop.f32.mrf.mxu0
    %v132 = vadd.f32 0.0, %v131
    %133 = vdwg.mxu0
    %134 = vmatpush.msra.mxu0 0.0
    %135 = vmatpush.msra.mxu0 0.0
    %136 = vmatpush.msra.mxu0 0.0
    %137 = vmatpush.msra.mxu0 0.0
    %138 = vmatpush.msra.mxu0 0.0
    %139 = vmatpush.msra.mxu0 0.0
    %140 = vmatpush.msra.mxu0 0.0
    %141 = vmatpush.msra.mxu0 0.0
    %142 = vmatpush.msra.mxu0 %v67
    %143 = vmatpush.msra.mxu0 %v65
    %144 = vmatpush.msra.mxu0 %v63
    %145 = vmatpush.msra.mxu0 %v61
    %146 = vmatpush.msra.mxu0 %v59
    %147 = vmatpush.msra.mxu0 %v57
    %148 = vmatpush.msra.mxu0 %v55
    %149 = vmatpush.msra.mxu0 %v53
    %150 = vmatmul.f32.gmra.mxu0 %v70
    %v151 = vpop.f32.mrf.mxu0
    %v152 = vadd.f32 0.0, %v151
    %153 = vmatmul.f32.gmra.mxu0 %v73
    %v154 = vpop.f32.mrf.mxu0
    %v155 = vadd.f32 0.0, %v154
    %156 = vmatmul.f32.gmra.mxu0 %v76
    %v157 = vpop.f32.mrf.mxu0
    %v158 = vadd.f32 0.0, %v157
    %159 = vmatmul.f32.gmra.mxu0 %v79
    %v160 = vpop.f32.mrf.mxu0
    %v161 = vadd.f32 0.0, %v160
    %162 = vmatmul.f32.gmra.mxu0 %v82
    %v163 = vpop.f32.mrf.mxu0
    %v164 = vadd.f32 0.0, %v163
    %165 = vmatmul.f32.gmra.mxu0 %v85
    %v166 = vpop.f32.mrf.mxu0
    %v167 = vadd.f32 0.0, %v166
    %168 = vmatmul.f32.gmra.mxu0 %v88
    %v169 = vpop.f32.mrf.mxu0
    %v170 = vadd.f32 0.0, %v169
    %171 = vmatmul.f32.gmra.mxu0 %v91
    %v172 = vpop.f32.mrf.mxu0
    %v173 = vadd.f32 0.0, %v172
    %174 = vdwg.mxu0
    %175 = vst [vmem:[#allocation7] sm:$0xff] %v111
    %176 = vst [vmem:[#allocation7 + $0x8] sm:$0xff] %v152
    %177 = vst [vmem:[#allocation7 + $0x10] sm:$0xff] %v114
    %178 = vst [vmem:[#allocation7 + $0x18] sm:$0xff] %v155
    %179 = vst [vmem:[#allocation7 + $0x20] sm:$0xff] %v117
    %180 = vst [vmem:[#allocation7 + $0x28] sm:$0xff] %v158
    %181 = vst [vmem:[#allocation7 + $0x30] sm:$0xff] %v120
    %182 = vst [vmem:[#allocation7 + $0x38] sm:$0xff] %v161
    %183 = vst [vmem:[#allocation7 + $0x40] sm:$0xff] %v123
    %184 = vst [vmem:[#allocation7 + $0x48] sm:$0xff] %v164
    %185 = vst [vmem:[#allocation7 + $0x50] sm:$0xff] %v126
    %186 = vst [vmem:[#allocation7 + $0x58] sm:$0xff] %v167
    %187 = vst [vmem:[#allocation7 + $0x60] sm:$0xff] %v129
    %188 = vst [vmem:[#allocation7 + $0x68] sm:$0xff] %v170
    %189 = vst [vmem:[#allocation7 + $0x70] sm:$0xff] %v132
    %190 = vst [vmem:[#allocation7 + $0x78] sm:$0xff] %v173
    // Predicated region
    $region18: #{tpu_custom_call.1} parent=1 // pred_check
      _
    $region19: #{tpu_custom_call.1} parent=1 // pred_check_branch
      %192 = sbr.rel (0) target = $region21
    $region20: #{tpu_custom_call.1} parent=1 // pred_region
      %194 = vsyncadd [#allocation4], 0
      %s195 = sshll.u32 [#allocation7], 4
      %s196 = int_to_ptr.vmem [resolvable:$true] %s195
      %s197 = sshll.u32 %s2, 4
      %s198 = int_to_ptr.hbm [resolvable:$true] %s197
      %203 = dma.vmem_to_hbm [thread:$0]  %s196, 2048, %s198, [#allocation4], 256, 256, 16
    $region21: #{tpu_custom_call.1} parent=1 // pred_fallthru
      _
    // Predicated region
    $region22: #{tpu_custom_call.1} parent=1 // pred_check
      _
    $region23: #{tpu_custom_call.1} parent=1 // pred_check_branch
      %205 = sbr.rel (0) target = $region25
    $region24: #{tpu_custom_call.1} parent=1 // pred_region
      %207 = dma.done [#allocation4], 2048
    $region25: #{tpu_custom_call.1} parent=1 // pred_fallthru
      _
    %208 = vsyncpa [#allocation3], 1
    %209 = vsyncpa [#allocation6], 1
    %210 = vsyncpa [#allocation4], 1

</llo_original>
